<compile_context>
chip_gen: v5e
topology: v5e:2x2
jax: 0.10.0
libtpu: 0.0.40
codegen_flags: <defaults>
</compile_context>

<pallas_src>
import functools

import jax
import jax.numpy as jnp
from jax.experimental import pallas as pl
from jax.experimental.pallas import tpu as pltpu


def input_kernel(x_ref, wt_ref, b_ref, o_ref):
    # x_ref:  (TB, F)  activation tile, native row-major layout
    # wt_ref: (F, H)   pre-transposed weight, resident in VMEM
    # b_ref:  (1, H)   bias, broadcasts along the batch (sublane) axis
    # o_ref:  (TB, H)  output tile
    h = jnp.dot(x_ref[...], wt_ref[...], preferred_element_type=jnp.float32)
    o_ref[...] = jnp.maximum(h + b_ref[...], 0.0).astype(o_ref.dtype)


def _round_up(x, m):
    return ((x + m - 1) // m) * m


def _pick_batch_tile(B, F, H, tb_req):
    """Batch tile: as large as the VMEM budget allows, multiple of 8."""
    try:
        vmem_bytes = pltpu.get_tpu_info().vmem_capacity_bytes  # 64 MiB on v7x
    except Exception:  # conservative fallback if the query is unavailable
        vmem_bytes = 64 * 1024 * 1024
    # Use at most a quarter of physical VMEM for the double-buffered x/out
    # streams plus the resident weight/bias (generous headroom everywhere).
    budget = vmem_bytes // 4
    resident = 4 * (F * H + H)
    per_row = 4 * 2 * (F + H)           # double-buffered in + out bytes / row
    tb_cap = max(8, (budget - resident) // per_row)
    tb = min(tb_req, tb_cap, _round_up(B, 8))
    tb = max(8, (tb // 8) * 8)
    # v7x has 2 TensorCores; keep >=2 "parallel" grid tiles when the batch is
    # large enough that splitting stays far above the ~0.35us per-step cost.
    if B >= 2048 and pl.cdiv(B, tb) < 2:
        tb = max(8, _round_up(pl.cdiv(B, 2), 8))
    return tb


@functools.partial(jax.jit, static_argnames=("tb",))
def input_forward(nodes, weight, bias, *, tb=2048):
    """relu(nodes @ weight.T + bias) via a batch-tiled Pallas kernel.

    nodes:  (B, feat_size) float32
    weight: (hidden_size, feat_size) float32  (PyTorch nn.Linear layout)
    bias:   (hidden_size,) float32            (PyTorch nn.Linear layout)
    returns (B, hidden_size) float32
    """
    B, F = nodes.shape
    H = weight.shape[0]

    w_t = weight.T                      # (F, H): tiny one-time layout fix-up
    b2d = bias.reshape(1, H)

    tb_eff = _pick_batch_tile(B, F, H, tb)
    num_tiles = pl.cdiv(B, tb_eff)

    # Explicit scoped-VMEM limit only once tiles get big (v5e's default
    # scoped limit is 16 MiB); otherwise leave the compiler default alone.
    vmem_needed = 4 * (F * H + H) + 2 * 4 * tb_eff * (F + H)
    if vmem_needed > 8 * 1024 * 1024:
        params = pltpu.CompilerParams(
            dimension_semantics=("parallel",),
            vmem_limit_bytes=min(2 * vmem_needed, 64 * 1024 * 1024))
    else:
        params = pltpu.CompilerParams(dimension_semantics=("parallel",))

    cost = pl.CostEstimate(
        flops=2 * B * F * H,
        transcendentals=0,
        bytes_accessed=4 * (B * F + B * H + F * H + H))

    return pl.pallas_call(
        input_kernel,
        out_shape=jax.ShapeDtypeStruct((B, H), jnp.float32),
        grid=(num_tiles,),
        in_specs=[
            pl.BlockSpec((tb_eff, F), lambda i: (i, 0)),   # nodes, batch-tiled
            pl.BlockSpec((F, H), lambda i: (0, 0)),        # weight^T, resident
            pl.BlockSpec((1, H), lambda i: (0, 0)),        # bias, resident
        ],
        out_specs=pl.BlockSpec((tb_eff, H), lambda i: (i, 0)),
        compiler_params=params,
        cost_estimate=cost,
    )(nodes, w_t, b2d)


def init_params(key, feat_size, hidden_size):
    # TODO(synk): layer_init_filter is not defined in the spec; using a plain
    # deterministic normal init as a stand-in.
    kw, kb = jax.random.split(key)
    weight = jax.random.normal(kw, (hidden_size, feat_size), jnp.float32) * 0.1
    bias = jax.random.normal(kb, (hidden_size,), jnp.float32) * 0.01
    return weight, bias


def input_ref(nodes, weight, bias):
    """Pure-JAX reference of the PyTorch forward: relu(Linear(nodes))."""
    return jnp.maximum(nodes @ weight.T + bias, 0.0)


if __name__ == "__main__":
    feat_size, hidden_size, batch = 48, 32, 16

    key = jax.random.PRNGKey(0)
    k_nodes, k_params = jax.random.split(key)

    nodes = jax.random.normal(k_nodes, (batch, feat_size), jnp.float32)
    weight, bias = init_params(k_params, feat_size, hidden_size)

    out = input_forward(nodes, weight, bias)
    out = jax.block_until_ready(out)

    ref = input_ref(nodes, weight, bias)
    assert out.shape == (batch, hidden_size)
    assert jnp.allclose(out, ref, atol=1e-5, rtol=1e-5)

    print("KERNEL_OK")
</pallas_src>

<mosaic_0001>
module attributes {stable_mosaic.version = 11 : i64} {
  func.func @input_kernel(%arg0: i32, %arg1: memref<16x48xf32, #tpu.memory_space<vmem>>, %arg2: memref<48x32xf32, #tpu.memory_space<vmem>>, %arg3: memref<1x32xf32, #tpu.memory_space<vmem>>, %arg4: memref<16x32xf32, #tpu.memory_space<vmem>>) attributes {dimension_semantics = [#tpu.dimension_semantics<parallel>], iteration_bounds = array<i64: 1>, scalar_prefetch = 0 : i64, scratch_operands = 0 : i64, tpu.core_type = #tpu.core_type<tc>, window_params = [{transform_indices = @transform_0, window_bounds = array<i64: 16, 48>}, {pipeline_mode = #tpu.pipeline_mode<synchronous>, transform_indices = @transform_1, window_bounds = array<i64: 48, 32>}, {pipeline_mode = #tpu.pipeline_mode<synchronous>, transform_indices = @transform_2, window_bounds = array<i64: 1, 32>}, {transform_indices = @transform_3, window_bounds = array<i64: 16, 32>}]} {
    %c0 = arith.constant 0 : index
    %c0_0 = arith.constant 0 : index
    %0 = vector.load %arg1[%c0, %c0_0] : memref<16x48xf32, #tpu.memory_space<vmem>>, vector<16x48xf32>
    %c0_1 = arith.constant 0 : index
    %c0_2 = arith.constant 0 : index
    %1 = vector.load %arg2[%c0_1, %c0_2] : memref<48x32xf32, #tpu.memory_space<vmem>>, vector<48x32xf32>
    %cst = arith.constant dense<0.000000e+00> : vector<16x32xf32>
    %2 = tpu.matmul %0, %1, %cst {dimension_numbers = #tpu.dot_dimension_numbers<[1], [0], [0], [1], [0, 0, 1, 1], [], []>} : vector<16x48xf32>, vector<48x32xf32>, vector<16x32xf32> -> vector<16x32xf32>
    %c0_3 = arith.constant 0 : index
    %c0_4 = arith.constant 0 : index
    %3 = vector.load %arg3[%c0_3, %c0_4] : memref<1x32xf32, #tpu.memory_space<vmem>>, vector<1x32xf32>
    %4 = vector.broadcast %3 : vector<1x32xf32> to vector<16x32xf32>
    %5 = arith.addf %2, %4 : vector<16x32xf32>
    %cst_5 = arith.constant 0.000000e+00 : f32
    %6 = vector.broadcast %cst_5 : f32 to vector<16x32xf32>
    %7 = arith.maximumf %5, %6 : vector<16x32xf32>
    %c0_6 = arith.constant 0 : index
    %c0_7 = arith.constant 0 : index
    %8 = vector.load %arg4[%c0_6, %c0_7] : memref<16x32xf32, #tpu.memory_space<vmem>>, vector<16x32xf32>
    tpu.vector_store %arg4[%c0_6, %c0_7], %7 {strides = array<i32>} : memref<16x32xf32, #tpu.memory_space<vmem>>, vector<16x32xf32>,
    return
  }
  func.func @transform_0(%arg0: i32) -> (i32, i32) {
    %c0_i32 = arith.constant 0 : i32
    %c0_i32_0 = arith.constant 0 : i32
    return %arg0, %c0_i32 : i32, i32
  }
  func.func @transform_1(%arg0: i32) -> (i32, i32) {
    %c0_i32 = arith.constant 0 : i32
    %c0_i32_0 = arith.constant 0 : i32
    %c0_i32_1 = arith.constant 0 : i32
    return %c0_i32, %c0_i32_0 : i32, i32
  }
  func.func @transform_2(%arg0: i32) -> (i32, i32) {
    %c0_i32 = arith.constant 0 : i32
    %c0_i32_0 = arith.constant 0 : i32
    %c0_i32_1 = arith.constant 0 : i32
    return %c0_i32, %c0_i32_0 : i32, i32
  }
  func.func @transform_3(%arg0: i32) -> (i32, i32) {
    %c0_i32 = arith.constant 0 : i32
    %c0_i32_0 = arith.constant 0 : i32
    return %arg0, %c0_i32 : i32, i32
  }
}

</mosaic_0001>

<llo_original>
// kernel: input_forward.1
$region0: #{input_forward.1}
  #allocation0 [shape = 'u32[]', space=smem, size = 0x4, offset = 0x4, fixed_abs, tag = 'smem constant byte address 0x4 - core index']
  #allocation1 [shape = 'u32[72,128]{1,0:T(1,128)}', space=vmem, size = 0x9000, scoped, tag = 'internal scratch']
  %s0 = inlined_call_operand.vmem [shape: f32[16,48], index: 0, kind: input, shape index: {}]
  %s1 = inlined_call_operand.vmem [shape: f32[48,32], index: 1, kind: input, shape index: {}]
  %s2 = inlined_call_operand.vmem [shape: f32[1,32], index: 2, kind: input, shape index: {}]
  %s3 = inlined_call_operand.hbm [shape: f32[16,32], index: 3, kind: output, shape index: {}]
  %s4 = sld [smem:[#allocation0]]
  $region22: #{input_forward.1} parent=0
    _
  %s6 = ssub.s32 1, %s4
  %s7 = scalar_select 0, %s6, %s4
  $region1: #{input_forward.1} parent=0
    #allocation2 [shape = 'u8[8192]{0}', space=vmem, size = 0x2000, scoped, tag = 'output window, operand 0, single buffered']
    #allocation3 [shape = 's32[1]{0}', space=sflag, size = 0x4, scoped, tag = 'scoped memory for input_forward.1']
    %8 = vsyncpa [#allocation3], 0
    // Predicated region
    $region2: #{input_forward.1} parent=1 // pred_check
      _
    $region3: #{input_forward.1} parent=1 // pred_check_branch
      %10 = sbr.rel (0) target = $region5
    $region4: #{input_forward.1} parent=1 // pred_region
      _
    $region5: #{input_forward.1} parent=1 // pred_fallthru
      _
    // Predicated region
    $region6: #{input_forward.1} parent=1 // pred_check
      _
    $region7: #{input_forward.1} parent=1 // pred_check_branch
      %12 = sbr.rel (0) target = $region9
    $region8: #{input_forward.1} parent=1 // pred_region
      _
    $region9: #{input_forward.1} parent=1 // pred_fallthru
      _
    // Predicated region
    $region10: #{input_forward.1} parent=1 // pred_check
      _
    $region11: #{input_forward.1} parent=1 // pred_check_branch
      %14 = sbr.rel (0) target = $region13
    $region12: #{input_forward.1} parent=1 // pred_region
      _
    $region13: #{input_forward.1} parent=1 // pred_fallthru
      _
    %v15 = vld [vmem:[%s0] sm:$0xff]
    %v16 = vld [vmem:[%s0 + $0x8] sm:$0xff]
    %v17 = vld [vmem:[%s1] sm:$0xff]
    %v18 = vld [vmem:[%s1 + $0x8] sm:$0xff]
    %v19 = vld [vmem:[%s1 + $0x10] sm:$0xff]
    %v20 = vld [vmem:[%s1 + $0x18] sm:$0xff]
    %v21 = vld [vmem:[%s1 + $0x20] sm:$0xff]
    %v22 = vld [vmem:[%s1 + $0x28] sm:$0xff]
    %v23 = vld [vmem:[%s2] sm:$0x1]
    %v25 = vperm.slane %v23, 0
    %vm27 = vcmask 392192
    %v29 = vsel %vm27, %v15, 0
    %v32 = vsel %vm27, %v16, 0
    %34 = vmatpush.msra.mxu0 0.0
    %35 = vmatpush.msra.mxu0 0.0
    %36 = vmatpush.msra.mxu0 0.0
    %37 = vmatpush.msra.mxu0 0.0
    %38 = vmatpush.msra.mxu0 0.0
    %39 = vmatpush.msra.mxu0 0.0
    %40 = vmatpush.msra.mxu0 0.0
    %41 = vmatpush.msra.mxu0 0.0
    %42 = vmatpush.msra.mxu0 0.0
    %43 = vmatpush.msra.mxu0 0.0
    %44 = vmatpush.msra.mxu0 %v22
    %45 = vmatpush.msra.mxu0 %v21
    %46 = vmatpush.msra.mxu0 %v20
    %47 = vmatpush.msra.mxu0 %v19
    %48 = vmatpush.msra.mxu0 %v18
    %49 = vmatpush.msra.mxu0 %v17
    %50 = vmatmul.f32.gmra.mxu0 %v29
    %v51 = vpop.f32.mrf.mxu0
    %v52 = vadd.f32 %v25, %v51
    %53 = vmatmul.f32.gmra.mxu0 %v32
    %v54 = vpop.f32.mrf.mxu0
    %v55 = vadd.f32 %v25, %v54
    %56 = vdwg.mxu0
    %v57 = vmax.f32 %v52, 0.0
    %v58 = vmax.f32 %v55, 0.0
    %vm59 = vcmask 261120
    %60 = vst.msk [vmem:[#allocation2] sm:$0xff] %vm59, %v57
    %61 = vst.msk [vmem:[#allocation2 + $0x8] sm:$0xff] %vm59, %v58
    // Predicated region
    $region14: #{input_forward.1} parent=1 // pred_check
      _
    $region15: #{input_forward.1} parent=1 // pred_check_branch
      %63 = sbr.rel (0) target = $region17
    $region16: #{input_forward.1} parent=1 // pred_region
      %65 = vsyncadd [#allocation3], 0
      %s66 = sshll.u32 [#allocation2], 4
      %s67 = int_to_ptr.vmem [resolvable:$true] %s66
      %s68 = sshll.u32 %s3, 4
      %s69 = int_to_ptr.hbm [resolvable:$true] %s68
      %74 = dma.vmem_to_hbm [thread:$0]  %s67, 256, %s69, [#allocation3], 128, 128, 8
    $region17: #{input_forward.1} parent=1 // pred_fallthru
      _
    // Predicated region
    $region18: #{input_forward.1} parent=1 // pred_check
      _
    $region19: #{input_forward.1} parent=1 // pred_check_branch
      %76 = sbr.rel (0) target = $region21
    $region20: #{input_forward.1} parent=1 // pred_region
      %78 = dma.done [#allocation3], 256
    $region21: #{input_forward.1} parent=1 // pred_fallthru
      _
    %79 = vsyncpa [#allocation3], 1

</llo_original>
